<compile_context>
chip_gen: v5e
topology: v5e:2x2
jax: 0.10.0
libtpu: 0.0.40
codegen_flags: <defaults>
</compile_context>

<pallas_src>
import functools

import jax
import jax.numpy as jnp
from jax.experimental import pallas as pl
from jax.experimental.pallas import tpu as pltpu

LANES = 128
SUBLANES = 8


def _device_kind() -> str:
    try:
        return jax.devices()[0].device_kind.lower()
    except Exception:
        return ""


def _default_tile_rows() -> int:
    # v5e scoped-VMEM default is 16 MiB -> 2 inputs x 2 buffers x 2 MiB = 8 MiB.
    # v6e/v7x default is 32 MiB      -> 2 inputs x 2 buffers x 4 MiB = 16 MiB.
    kind = _device_kind()
    if "v5 lite" in kind or "v5e" in kind or "v5lite" in kind:
        return 4096   # 4096 x 128 x 4 B = 2 MiB per input block
    return 8192       # 8192 x 128 x 4 B = 4 MiB per input block


def _default_num_parts() -> int:
    # Only v7x has 2 TensorCores per chip; on single-TC chips extra parts are
    # pure (small) overhead, so default to 1 there.
    kind = _device_kind()
    if "v7" in kind or "7x" in kind:
        return 2
    return 1


def _mse_kernel(o_ref, r_ref, out_ref, *, tile_rows, total_blocks, last_rows,
                has_dup):
    """Accumulate sum((r - o)^2) of one (tile_rows, 128) block into an (8, 128)
    partial-sum tile that stays resident across the reduction grid axis."""
    j = pl.program_id(1)

    @pl.when(j == 0)
    def _():
        out_ref[...] = jnp.zeros_like(out_ref)

    # Global row-block index; the "parallel" axis owns a contiguous range.
    block_idx = pl.program_id(0) * pl.num_programs(1) + j

    def accum(vals):
        # Leading-axis sum of (tile_rows//8, 8, 128): pure VPU vreg adds,
        # no cross-lane work inside the hot loop.
        out_ref[...] += jnp.sum(
            vals.reshape(tile_rows // SUBLANES, SUBLANES, LANES), axis=0)

    def compute():
        diff = r_ref[...].astype(jnp.float32) - o_ref[...].astype(jnp.float32)
        sq = diff * diff
        if last_rows == tile_rows:
            # Blocks tile the slab exactly: mask-free everywhere.
            accum(sq)
        else:
            # Only the last real block is partial; row-only mask, gated so all
            # other steps stay mask-free.
            @pl.when(block_idx != total_blocks - 1)
            def _():
                accum(sq)

            @pl.when(block_idx == total_blocks - 1)
            def _():
                row = jax.lax.broadcasted_iota(jnp.int32, (tile_rows, LANES), 0)
                accum(jnp.where(row < last_rows, sq, 0.0))

    if has_dup:
        # total_blocks % num_parts != 0: the clamped duplicate trailing block
        # of the last part must not contribute.
        @pl.when(block_idx < total_blocks)
        def _():
            compute()
    else:
        compute()


def reconstruction_loss(original, reconstructed, *, tile_rows=None, num_parts=None):
    assert original.shape == reconstructed.shape, "shape mismatch"
    n_elems = original.size
    if n_elems == 0:
        return jnp.float32(0.0)

    if tile_rows is None:
        tile_rows = _default_tile_rows()
    if num_parts is None:
        num_parts = _default_num_parts()

    o_flat = original.reshape(-1)
    r_flat = reconstructed.reshape(-1)

    # Kernel consumes the largest prefix that is a whole number of (8,128)
    # vregs; the (< 1024 element) tail is summed with plain jnp in the wrapper
    # instead of padding (padding would materialize full HBM copies of both
    # inputs for a kernel whose entire cost is HBM traffic).
    chunk = SUBLANES * LANES
    n_main = (n_elems // chunk) * chunk
    rows = n_main // LANES            # multiple of 8

    tail_sum = jnp.float32(0.0)
    if n_main < n_elems:
        d = (r_flat[n_main:].astype(jnp.float32)
             - o_flat[n_main:].astype(jnp.float32))
        tail_sum = jnp.sum(d * d)

    if rows == 0:
        # Whole tensor fits in the tail path.
        return tail_sum / jnp.float32(n_elems)

    o2d = (o_flat if n_main == n_elems else o_flat[:n_main]).reshape(rows, LANES)
    r2d = (r_flat if n_main == n_elems else r_flat[:n_main]).reshape(rows, LANES)

    # Block sizing: rows and tile_rows_eff are multiples of 8 (BlockSpec and
    # the in-kernel (., 8, 128) reshape require it).
    tile_rows_eff = max(SUBLANES, (min(tile_rows, rows) // SUBLANES) * SUBLANES)
    total_blocks = -(-rows // tile_rows_eff)
    num_parts = max(1, min(num_parts, total_blocks))
    steps = -(-total_blocks // num_parts)
    has_dup = steps * num_parts > total_blocks
    last_rows = rows - (total_blocks - 1) * tile_rows_eff

    if has_dup:
        def in_map(p, j):
            # Clamp duplicate trailing blocks to a valid block index (their
            # contribution is skipped inside the kernel), so no OOB DMA.
            return (jnp.minimum(p * steps + j, total_blocks - 1), 0)
    else:
        def in_map(p, j):
            return (p * steps + j, 0)

    itemsize = jnp.dtype(original.dtype).itemsize
    cost = pl.CostEstimate(
        flops=3 * n_main,
        transcendentals=0,
        bytes_accessed=2 * n_main * itemsize + num_parts * SUBLANES * LANES * 4,
    )

    out = pl.pallas_call(
        functools.partial(
            _mse_kernel,
            tile_rows=tile_rows_eff,
            total_blocks=total_blocks,
            last_rows=last_rows,
            has_dup=has_dup,
        ),
        out_shape=jax.ShapeDtypeStruct((num_parts * SUBLANES, LANES), jnp.float32),
        grid_spec=pltpu.PrefetchScalarGridSpec(
            num_scalar_prefetch=0,
            grid=(num_parts, steps),
            in_specs=[
                pl.BlockSpec((tile_rows_eff, LANES), in_map),
                pl.BlockSpec((tile_rows_eff, LANES), in_map),
            ],
            out_specs=pl.BlockSpec((SUBLANES, LANES), lambda p, j: (p, 0)),
        ),
        compiler_params=pltpu.CompilerParams(
            dimension_semantics=("parallel", "arbitrary"),
        ),
        cost_estimate=cost,
    )(o2d, r2d)

    # Tiny final cross-lane reduction + mean normalization in the wrapper.
    return (jnp.sum(out) + tail_sum) / jnp.float32(n_elems)


if __name__ == "__main__":
    key = jax.random.PRNGKey(0)
    k1, k2 = jax.random.split(key)
    # Small shapes consistent with an image-reconstruction use case (NCHW).
    original = jax.random.normal(k1, (2, 4, 16, 16), dtype=jnp.float32)
    reconstructed = jax.random.normal(k2, (2, 4, 16, 16), dtype=jnp.float32)

    loss = reconstruction_loss(original, reconstructed)
    jax.block_until_ready(loss)

    # Reference check against plain JAX (same semantics as nn.MSELoss mean).
    ref = jnp.mean((reconstructed - original) ** 2)
    assert jnp.allclose(loss, ref, rtol=1e-5, atol=1e-6), (loss, ref)

    print("KERNEL_OK")
</pallas_src>

<mosaic_0001>
module attributes {stable_mosaic.version = 11 : i64} {
  func.func @_mse_kernel(%arg0: i32, %arg1: i32, %arg2: memref<16x128xf32, #tpu.memory_space<vmem>>, %arg3: memref<16x128xf32, #tpu.memory_space<vmem>>, %arg4: memref<8x128xf32, #tpu.memory_space<vmem>>) attributes {dimension_semantics = [#tpu.dimension_semantics<parallel>, #tpu.dimension_semantics<arbitrary>], iteration_bounds = array<i64: 1, 1>, scalar_prefetch = 0 : i64, scratch_operands = 0 : i64, tpu.core_type = #tpu.core_type<tc>, window_params = [{transform_indices = @transform_0, window_bounds = array<i64: 16, 128>}, {transform_indices = @transform_1, window_bounds = array<i64: 16, 128>}, {transform_indices = @transform_2, window_bounds = array<i64: 8, 128>}]} {
    %c0_i32 = arith.constant 0 : i32
    %0 = arith.cmpi eq, %arg1, %c0_i32 : i32
    %1 = arith.extui %0 : i1 to i32
    %c0_i32_0 = arith.constant 0 : i32
    %2 = arith.cmpi ne, %1, %c0_i32_0 : i32
    scf.if %2 {
      %cst_8 = arith.constant 0.000000e+00 : f32
      %12 = vector.broadcast %cst_8 : f32 to vector<8x128xf32>
      %c0_9 = arith.constant 0 : index
      %c0_10 = arith.constant 0 : index
      %13 = vector.load %arg4[%c0_9, %c0_10] : memref<8x128xf32, #tpu.memory_space<vmem>>, vector<8x128xf32>
      tpu.vector_store %arg4[%c0_9, %c0_10], %12 {strides = array<i32>} : memref<8x128xf32, #tpu.memory_space<vmem>>, vector<8x128xf32>,
    } else {
    }
    %c0 = arith.constant 0 : index
    %c0_1 = arith.constant 0 : index
    %3 = vector.load %arg3[%c0, %c0_1] : memref<16x128xf32, #tpu.memory_space<vmem>>, vector<16x128xf32>
    %c0_2 = arith.constant 0 : index
    %c0_3 = arith.constant 0 : index
    %4 = vector.load %arg2[%c0_2, %c0_3] : memref<16x128xf32, #tpu.memory_space<vmem>>, vector<16x128xf32>
    %5 = arith.subf %3, %4 : vector<16x128xf32>
    %6 = arith.mulf %5, %5 : vector<16x128xf32>
    %c0_4 = arith.constant 0 : index
    %c0_5 = arith.constant 0 : index
    %7 = vector.load %arg4[%c0_4, %c0_5] : memref<8x128xf32, #tpu.memory_space<vmem>>, vector<8x128xf32>
    %8 = vector.shape_cast %6 : vector<16x128xf32> to vector<2x8x128xf32>
    %cst = arith.constant dense<0.000000e+00> : vector<8x128xf32>
    %9 = vector.multi_reduction <add>, %8, %cst [0] : vector<2x8x128xf32> to vector<8x128xf32>
    %10 = arith.addf %7, %9 : vector<8x128xf32>
    %c0_6 = arith.constant 0 : index
    %c0_7 = arith.constant 0 : index
    %11 = vector.load %arg4[%c0_6, %c0_7] : memref<8x128xf32, #tpu.memory_space<vmem>>, vector<8x128xf32>
    tpu.vector_store %arg4[%c0_6, %c0_7], %10 {strides = array<i32>} : memref<8x128xf32, #tpu.memory_space<vmem>>, vector<8x128xf32>,
    return
  }
  func.func @transform_0(%arg0: i32, %arg1: i32) -> (i32, i32) {
    %c1_i32 = arith.constant 1 : i32
    %0 = arith.muli %arg0, %c1_i32 : i32
    %1 = arith.addi %0, %arg1 : i32
    %c0_i32 = arith.constant 0 : i32
    %c0_i32_0 = arith.constant 0 : i32
    return %1, %c0_i32 : i32, i32
  }
  func.func @transform_1(%arg0: i32, %arg1: i32) -> (i32, i32) {
    %c1_i32 = arith.constant 1 : i32
    %0 = arith.muli %arg0, %c1_i32 : i32
    %1 = arith.addi %0, %arg1 : i32
    %c0_i32 = arith.constant 0 : i32
    %c0_i32_0 = arith.constant 0 : i32
    return %1, %c0_i32 : i32, i32
  }
  func.func @transform_2(%arg0: i32, %arg1: i32) -> (i32, i32) {
    %c0_i32 = arith.constant 0 : i32
    %c0_i32_0 = arith.constant 0 : i32
    return %arg0, %c0_i32 : i32, i32
  }
}

</mosaic_0001>

<llo_original>
// kernel: tpu_custom_call.1
$region0: #{tpu_custom_call.1}
  #allocation0 [shape = 'u32[]', space=smem, size = 0x4, offset = 0x4, fixed_abs, tag = 'smem constant byte address 0x4 - core index']
  #allocation1 [shape = 'u32[72,128]{1,0:T(1,128)}', space=vmem, size = 0x9000, scoped, tag = 'internal scratch']
  %s0 = inlined_call_operand.hbm [shape: f32[16,128], index: 0, kind: input, shape index: {}]
  %s1 = inlined_call_operand.hbm [shape: f32[16,128], index: 1, kind: input, shape index: {}]
  %s2 = inlined_call_operand.hbm [shape: f32[8,128], index: 2, kind: output, shape index: {}]
  %s3 = sld [smem:[#allocation0]]
  $region30: #{tpu_custom_call.1} parent=0
    _
  %s5 = ssub.s32 1, %s3
  %s6 = scalar_select 0, %s5, %s3
  $region1: #{tpu_custom_call.1} parent=0
    #allocation2 [shape = 'u8[8192]{0}', space=vmem, size = 0x2000, scoped, tag = 'input window, operand 0, single buffered']
    #allocation3 [shape = 's32[1]{0}', space=sflag, size = 0x4, scoped, tag = 'scoped memory for tpu_custom_call.1']
    #allocation4 [shape = 's32[1]{0}', space=sflag, size = 0x4, scoped, tag = 'scoped memory for tpu_custom_call.1']
    #allocation5 [shape = 'u8[8192]{0}', space=vmem, size = 0x2000, scoped, tag = 'input window, operand 1, single buffered']
    #allocation6 [shape = 's32[1]{0}', space=sflag, size = 0x4, scoped, tag = 'scoped memory for tpu_custom_call.1']
    #allocation7 [shape = 'u8[4096]{0}', space=vmem, size = 0x1000, scoped, tag = 'output window, operand 0, single buffered']
    %7 = vsyncpa [#allocation3], 0
    %8 = vsyncpa [#allocation6], 0
    %9 = vsyncpa [#allocation4], 0
    // Predicated region
    $region2: #{tpu_custom_call.1} parent=1 // pred_check
      _
    $region3: #{tpu_custom_call.1} parent=1 // pred_check_branch
      %11 = sbr.rel (0) target = $region5
    $region4: #{tpu_custom_call.1} parent=1 // pred_region
      %s12 = sadd.s32 0, 0
      %s13 = smul.u32 2, %s12
      %15 = vsyncadd [#allocation3], 0
      %s16 = smul.addr %s13, 8
      %s17 = scalar_lea.hbm %s0, %s16
      %s18 = sshll.u32 %s17, 4
      %s19 = int_to_ptr.hbm [resolvable:$true] %s18
      %s20 = sshll.u32 [#allocation2], 4
      %s21 = int_to_ptr.vmem [resolvable:$true] %s20
      %26 = dma.hbm_to_vmem [thread:$0]  %s19, 256, %s21, [#allocation3], 128, 128, 8
    $region5: #{tpu_custom_call.1} parent=1 // pred_fallthru
      _
    // Predicated region
    $region6: #{tpu_custom_call.1} parent=1 // pred_check
      _
    $region7: #{tpu_custom_call.1} parent=1 // pred_check_branch
      %28 = sbr.rel (0) target = $region9
    $region8: #{tpu_custom_call.1} parent=1 // pred_region
      %s29 = sadd.s32 0, 0
      %s30 = smul.u32 2, %s29
      %32 = vsyncadd [#allocation6], 0
      %s33 = smul.addr %s30, 8
      %s34 = scalar_lea.hbm %s1, %s33
      %s35 = sshll.u32 %s34, 4
      %s36 = int_to_ptr.hbm [resolvable:$true] %s35
      %s37 = sshll.u32 [#allocation5], 4
      %s38 = int_to_ptr.vmem [resolvable:$true] %s37
      %43 = dma.hbm_to_vmem [thread:$0]  %s36, 256, %s38, [#allocation6], 128, 128, 8
    $region9: #{tpu_custom_call.1} parent=1 // pred_fallthru
      _
    // Predicated region
    $region10: #{tpu_custom_call.1} parent=1 // pred_check
      _
    $region11: #{tpu_custom_call.1} parent=1 // pred_check_branch
      %45 = sbr.rel (0) target = $region13
    $region12: #{tpu_custom_call.1} parent=1 // pred_region
      %47 = dma.done [#allocation3], 256
    $region13: #{tpu_custom_call.1} parent=1 // pred_fallthru
      _
    // Predicated region
    $region14: #{tpu_custom_call.1} parent=1 // pred_check
      _
    $region15: #{tpu_custom_call.1} parent=1 // pred_check_branch
      %49 = sbr.rel (0) target = $region17
    $region16: #{tpu_custom_call.1} parent=1 // pred_region
      %51 = dma.done [#allocation6], 256
    $region17: #{tpu_custom_call.1} parent=1 // pred_fallthru
      _
    %s52 = sadd.s32 0, 0
    %s53 = smul.u32 2, %s52
    %s54 = sadd.s32 0, 0
    %s55 = smul.u32 2, %s54
    %p56 = scmp.eq.s32.totalorder 0, 0
    // Predicated region
    $region18: #{tpu_custom_call.1} parent=1 // pred_check
      %p57 = pneg %p56
    $region19: #{tpu_custom_call.1} parent=1 // pred_check_branch
      %59 = sbr.rel (%p57) target = $region21
    $region20: #{tpu_custom_call.1} parent=1 // pred_region
      %60 = vst [vmem:[#allocation7] sm:$0xff] 0.0
    $region21: #{tpu_custom_call.1} parent=1 // pred_fallthru
      _
    %v61 = vld [vmem:[#allocation5] sm:$0xff]
    %v62 = vld [vmem:[#allocation5 + $0x8] sm:$0xff]
    %v63 = vld [vmem:[#allocation2] sm:$0xff]
    %v64 = vld [vmem:[#allocation2 + $0x8] sm:$0xff]
    %v65 = vsub.f32 %v61, %v63
    %v66 = vsub.f32 %v62, %v64
    %v67 = vmul.f32 %v65, %v65
    %v68 = vmul.f32 %v66, %v66
    %v69 = vld [vmem:[#allocation7] sm:$0xff]
    %v70 = vadd.f32 %v67, %v68
    %v71 = vadd.f32 %v69, %v70
    %72 = vst [vmem:[#allocation7] sm:$0xff] %v71
    // Predicated region
    $region22: #{tpu_custom_call.1} parent=1 // pred_check
      _
    $region23: #{tpu_custom_call.1} parent=1 // pred_check_branch
      %74 = sbr.rel (0) target = $region25
    $region24: #{tpu_custom_call.1} parent=1 // pred_region
      %76 = vsyncadd [#allocation4], 0
      %s78 = sshll.u32 [#allocation7], 4
      %s79 = int_to_ptr.vmem [resolvable:$true] %s78
      %s80 = sshll.u32 %s2, 4
      %s81 = int_to_ptr.hbm [resolvable:$true] %s80
      %83 = dma.vmem_to_hbm [thread:$0]  %s79, 128, %s81, [#allocation4]
    $region25: #{tpu_custom_call.1} parent=1 // pred_fallthru
      _
    // Predicated region
    $region26: #{tpu_custom_call.1} parent=1 // pred_check
      _
    $region27: #{tpu_custom_call.1} parent=1 // pred_check_branch
      %85 = sbr.rel (0) target = $region29
    $region28: #{tpu_custom_call.1} parent=1 // pred_region
      %87 = dma.done [#allocation4], 128
    $region29: #{tpu_custom_call.1} parent=1 // pred_fallthru
      _
    %88 = vsyncpa [#allocation3], 1
    %89 = vsyncpa [#allocation6], 1
    %90 = vsyncpa [#allocation4], 1

</llo_original>
